<compile_context>
chip_gen: v7x
topology: tpu7x:2x2x1
jax: 0.10.0
libtpu: 0.0.40
codegen_flags: <defaults>
</compile_context>

<pallas_src>
import jax
import jax.numpy as jnp
from jax.experimental import pallas as pl
from jax.experimental.pallas import tpu as pltpu


def _round_up(x, m):
    return (x + m - 1) // m * m


def ffn_beta_kernel(sT_ref, w1t_ref, b1_ref, w2t_ref, b2_ref, w3t_ref, b3_ref,
                    aT_ref, out_ref):
    # All activations are (features, tm): batch on lanes, features on sublanes.
    x = sT_ref[...]                                                   # (s_dim, tm)
    h1 = jnp.dot(w1t_ref[...], x,
                 preferred_element_type=jnp.float32) + b1_ref[...]    # (h1, tm)
    h1 = jnp.maximum(h1, 0.0)
    h2 = jnp.dot(w2t_ref[...], h1,
                 preferred_element_type=jnp.float32) + b2_ref[...]    # (h2, tm)
    h2 = jnp.maximum(h2, 0.0)
    beta_all = jnp.dot(w3t_ref[...], h2,
                       preferred_element_type=jnp.float32) + b3_ref[...]  # (num_a, tm)
    beta_all = jnp.abs(beta_all)                                      # pos_head
    # gather(dim=-1, index=a): exact sublane select (no 0*Inf leakage), then a
    # cheap sublane reduce -> lane-dense (1, tm) row written with unmasked vst.
    row = jax.lax.broadcasted_iota(jnp.int32, beta_all.shape, 0)      # (num_a, tm)
    sel = jnp.where(row == aT_ref[...], beta_all, 0.0)                # aT: (1, tm)
    out_ref[...] = jnp.sum(sel, axis=0, keepdims=True)                # (1, tm)


def ffn_beta_forward(s, a, params, *, max_tile_cols=8192):
    """s: (B, s_dim) f32, a: (B,) int -> beta: (B, 1) f32.

    NOTE: like jnp.take_along_axis (and unlike torch.gather), out-of-range
    action indices yield 0.0 rather than raising.
    """
    w1, b1, w2, b2, w3, b3 = params
    B, s_dim = s.shape
    h1 = w1.shape[1]
    h2 = w2.shape[1]
    num_a = w3.shape[1]

    # Batch tile on the lane axis: multiple of 128.  Big tiles minimize the
    # per-grid-step overhead (streamed VMEM is only ~24 B/row, so even 8K-wide
    # double-buffered tiles are ~1 MiB).  If the whole batch fits in one tile,
    # split into 2 even tiles so the parallel axis feeds both v7x TensorCores.
    b128 = _round_up(B, 128)
    if b128 <= max_tile_cols:
        tm = _round_up(-(-b128 // 2), 128) if b128 >= 256 else b128
    else:
        tm = max_tile_cols
    padded_b = _round_up(B, tm)
    pad = padded_b - B
    if pad:
        s = jnp.pad(s, ((0, pad), (0, 0)))
        a = jnp.pad(a, (0, pad))

    # Wrapper-side transposes are tiny one-off XLA ops (layout plumbing so the
    # kernel sees lane-dense tiles).
    sT = s.T                                        # (s_dim, padded_b)
    aT = a.reshape(1, padded_b).astype(jnp.int32)   # (1, padded_b)
    w1t, b1t = w1.T, b1.reshape(h1, 1)              # (h1, s_dim), (h1, 1)
    w2t, b2t = w2.T, b2.reshape(h2, 1)              # (h2, h1),   (h2, 1)
    w3t, b3t = w3.T, b3.reshape(num_a, 1)           # (num_a, h2),(num_a, 1)

    grid = (padded_b // tm,)
    batch_map = lambda i: (0, i)   # streamed per-tile along lanes
    const_map = lambda i: (0, 0)   # VMEM-resident (DMA'd once)

    in_specs = [
        pl.BlockSpec((s_dim, tm), batch_map),   # s tile (batch on lanes)
        pl.BlockSpec(w1t.shape, const_map),     # resident weights / biases
        pl.BlockSpec(b1t.shape, const_map),
        pl.BlockSpec(w2t.shape, const_map),
        pl.BlockSpec(b2t.shape, const_map),
        pl.BlockSpec(w3t.shape, const_map),
        pl.BlockSpec(b3t.shape, const_map),
        pl.BlockSpec((1, tm), batch_map),       # a tile
    ]
    out_spec = pl.BlockSpec((1, tm), batch_map)  # lane-dense output row

    flops = 2 * padded_b * (s_dim * h1 + h1 * h2 + h2 * num_a)
    bytes_accessed = 4 * (padded_b * s_dim + w1.size + b1.size + w2.size
                          + b2.size + w3.size + b3.size + padded_b + padded_b)

    out = pl.pallas_call(
        ffn_beta_kernel,
        out_shape=jax.ShapeDtypeStruct((1, padded_b), jnp.float32),
        grid=grid,
        in_specs=in_specs,
        out_specs=out_spec,
        compiler_params=pltpu.CompilerParams(
            dimension_semantics=("parallel",),   # megacore sharding on v7x
        ),
        cost_estimate=pl.CostEstimate(
            flops=flops, transcendentals=0, bytes_accessed=bytes_accessed),
    )(sT, w1t, b1t, w2t, b2t, w3t, b3t, aT)
    return out[0, :B][:, None]


def init_params(key, s_dim, hidden1, hidden2, num_a):
    """Deterministic synthetic parameters (shapes match FFNet with
    layer_sizes=[hidden1, hidden2]); stored as (in, out) so x @ W + b matches
    torch.nn.Linear numerics."""
    k1, k2, k3, k4, k5, k6 = jax.random.split(key, 6)
    w1 = jax.random.normal(k1, (s_dim, hidden1), jnp.float32) * 0.2
    b1 = jax.random.normal(k2, (1, hidden1), jnp.float32) * 0.05
    w2 = jax.random.normal(k3, (hidden1, hidden2), jnp.float32) * 0.2
    b2 = jax.random.normal(k4, (1, hidden2), jnp.float32) * 0.05
    w3 = jax.random.normal(k5, (hidden2, num_a), jnp.float32) * 0.2
    b3 = jax.random.normal(k6, (1, num_a), jnp.float32) * 0.05
    return (w1, b1, w2, b2, w3, b3)


def reference_forward(s, a, params):
    """Pure-JAX reference of the PyTorch module (eval mode)."""
    w1, b1, w2, b2, w3, b3 = params
    h = jnp.maximum(s @ w1 + b1, 0.0)
    h = jnp.maximum(h @ w2 + b2, 0.0)
    beta_all = jnp.abs(h @ w3 + b3)
    return jnp.take_along_axis(beta_all, a[:, None], axis=-1)


if __name__ == "__main__":
    key = jax.random.PRNGKey(0)
    s_dim, num_a = 4, 4
    hidden1, hidden2 = 32, 32          # config['beta_layers'] = [32, 32]
    k_s, k_a, k_p = jax.random.split(key, 3)
    params = init_params(k_p, s_dim, hidden1, hidden2, num_a)

    # Small-shape check (single tile).
    B = 8
    s = jax.random.normal(k_s, (B, s_dim), jnp.float32)
    a = jax.random.randint(k_a, (B,), 0, num_a, jnp.int32)
    beta = jax.block_until_ready(ffn_beta_forward(s, a, params))
    ref = reference_forward(s, a, params)
    assert beta.shape == (B, 1)
    assert jnp.allclose(beta, ref, atol=1e-5, rtol=1e-5), (beta, ref)

    # Multi-tile check: exercises batch padding, the 2-tile split (megacore),
    # resident weights, and the lane-dense output path.
    B2 = 1000
    k_s2, k_a2 = jax.random.split(jax.random.PRNGKey(1))
    s2 = jax.random.normal(k_s2, (B2, s_dim), jnp.float32)
    a2 = jax.random.randint(k_a2, (B2,), 0, num_a, jnp.int32)
    beta2 = jax.block_until_ready(ffn_beta_forward(s2, a2, params))
    ref2 = reference_forward(s2, a2, params)
    assert beta2.shape == (B2, 1)
    assert jnp.allclose(beta2, ref2, atol=1e-5, rtol=1e-5)

    # Large check: multiple 8192-wide tiles plus a padded remainder tile.
    B3 = 20000
    k_s3, k_a3 = jax.random.split(jax.random.PRNGKey(2))
    s3 = jax.random.normal(k_s3, (B3, s_dim), jnp.float32)
    a3 = jax.random.randint(k_a3, (B3,), 0, num_a, jnp.int32)
    beta3 = jax.block_until_ready(ffn_beta_forward(s3, a3, params))
    ref3 = reference_forward(s3, a3, params)
    assert beta3.shape == (B3, 1)
    assert jnp.allclose(beta3, ref3, atol=1e-5, rtol=1e-5)

    print("KERNEL_OK")
</pallas_src>

<mosaic_0001>
module attributes {stable_mosaic.version = 11 : i64} {
  func.func @ffn_beta_kernel(%arg0: i32, %arg1: memref<4x128xf32, #tpu.memory_space<vmem>>, %arg2: memref<32x4xf32, #tpu.memory_space<vmem>>, %arg3: memref<32x1xf32, #tpu.memory_space<vmem>>, %arg4: memref<32x32xf32, #tpu.memory_space<vmem>>, %arg5: memref<32x1xf32, #tpu.memory_space<vmem>>, %arg6: memref<4x32xf32, #tpu.memory_space<vmem>>, %arg7: memref<4x1xf32, #tpu.memory_space<vmem>>, %arg8: memref<1x128xi32, #tpu.memory_space<vmem>>, %arg9: memref<1x128xf32, #tpu.memory_space<vmem>>) attributes {dimension_semantics = [#tpu.dimension_semantics<parallel>], iteration_bounds = array<i64: 1>, scalar_prefetch = 0 : i64, scratch_operands = 0 : i64, tpu.core_type = #tpu.core_type<tc>, window_params = [{transform_indices = @transform_0, window_bounds = array<i64: 4, 128>}, {pipeline_mode = #tpu.pipeline_mode<synchronous>, transform_indices = @transform_1, window_bounds = array<i64: 32, 4>}, {pipeline_mode = #tpu.pipeline_mode<synchronous>, transform_indices = @transform_2, window_bounds = array<i64: 32, 1>}, {pipeline_mode = #tpu.pipeline_mode<synchronous>, transform_indices = @transform_3, window_bounds = array<i64: 32, 32>}, {pipeline_mode = #tpu.pipeline_mode<synchronous>, transform_indices = @transform_4, window_bounds = array<i64: 32, 1>}, {pipeline_mode = #tpu.pipeline_mode<synchronous>, transform_indices = @transform_5, window_bounds = array<i64: 4, 32>}, {pipeline_mode = #tpu.pipeline_mode<synchronous>, transform_indices = @transform_6, window_bounds = array<i64: 4, 1>}, {transform_indices = @transform_7, window_bounds = array<i64: 1, 128>}, {transform_indices = @transform_8, window_bounds = array<i64: 1, 128>}]} {
    %c0 = arith.constant 0 : index
    %c0_0 = arith.constant 0 : index
    %0 = vector.load %arg1[%c0, %c0_0] : memref<4x128xf32, #tpu.memory_space<vmem>>, vector<4x128xf32>
    %c0_1 = arith.constant 0 : index
    %c0_2 = arith.constant 0 : index
    %1 = vector.load %arg2[%c0_1, %c0_2] : memref<32x4xf32, #tpu.memory_space<vmem>>, vector<32x4xf32>
    %cst = arith.constant dense<0.000000e+00> : vector<32x128xf32>
    %2 = tpu.matmul %1, %0, %cst {dimension_numbers = #tpu.dot_dimension_numbers<[1], [0], [0], [1], [0, 0, 1, 1], [], []>} : vector<32x4xf32>, vector<4x128xf32>, vector<32x128xf32> -> vector<32x128xf32>
    %c0_3 = arith.constant 0 : index
    %c0_4 = arith.constant 0 : index
    %3 = vector.load %arg3[%c0_3, %c0_4] : memref<32x1xf32, #tpu.memory_space<vmem>>, vector<32x1xf32>
    %4 = vector.broadcast %3 : vector<32x1xf32> to vector<32x128xf32>
    %5 = arith.addf %2, %4 : vector<32x128xf32>
    %cst_5 = arith.constant 0.000000e+00 : f32
    %6 = vector.broadcast %cst_5 : f32 to vector<32x128xf32>
    %7 = arith.maximumf %5, %6 : vector<32x128xf32>
    %c0_6 = arith.constant 0 : index
    %c0_7 = arith.constant 0 : index
    %8 = vector.load %arg4[%c0_6, %c0_7] : memref<32x32xf32, #tpu.memory_space<vmem>>, vector<32x32xf32>
    %cst_8 = arith.constant dense<0.000000e+00> : vector<32x128xf32>
    %9 = tpu.matmul %8, %7, %cst_8 {dimension_numbers = #tpu.dot_dimension_numbers<[1], [0], [0], [1], [0, 0, 1, 1], [], []>} : vector<32x32xf32>, vector<32x128xf32>, vector<32x128xf32> -> vector<32x128xf32>
    %c0_9 = arith.constant 0 : index
    %c0_10 = arith.constant 0 : index
    %10 = vector.load %arg5[%c0_9, %c0_10] : memref<32x1xf32, #tpu.memory_space<vmem>>, vector<32x1xf32>
    %11 = vector.broadcast %10 : vector<32x1xf32> to vector<32x128xf32>
    %12 = arith.addf %9, %11 : vector<32x128xf32>
    %cst_11 = arith.constant 0.000000e+00 : f32
    %13 = vector.broadcast %cst_11 : f32 to vector<32x128xf32>
    %14 = arith.maximumf %12, %13 : vector<32x128xf32>
    %c0_12 = arith.constant 0 : index
    %c0_13 = arith.constant 0 : index
    %15 = vector.load %arg6[%c0_12, %c0_13] : memref<4x32xf32, #tpu.memory_space<vmem>>, vector<4x32xf32>
    %cst_14 = arith.constant dense<0.000000e+00> : vector<4x128xf32>
    %16 = tpu.matmul %15, %14, %cst_14 {dimension_numbers = #tpu.dot_dimension_numbers<[1], [0], [0], [1], [0, 0, 1, 1], [], []>} : vector<4x32xf32>, vector<32x128xf32>, vector<4x128xf32> -> vector<4x128xf32>
    %c0_15 = arith.constant 0 : index
    %c0_16 = arith.constant 0 : index
    %17 = vector.load %arg7[%c0_15, %c0_16] : memref<4x1xf32, #tpu.memory_space<vmem>>, vector<4x1xf32>
    %18 = vector.broadcast %17 : vector<4x1xf32> to vector<4x128xf32>
    %19 = arith.addf %16, %18 : vector<4x128xf32>
    %20 = math.absf %19 : vector<4x128xf32>
    %21 = tpu.iota {dimensions = array<i32: 0>} : vector<4x128xi32>
    %c0_17 = arith.constant 0 : index
    %c0_18 = arith.constant 0 : index
    %22 = vector.load %arg8[%c0_17, %c0_18] : memref<1x128xi32, #tpu.memory_space<vmem>>, vector<1x128xi32>
    %23 = vector.broadcast %22 : vector<1x128xi32> to vector<4x128xi32>
    %24 = arith.cmpi eq, %21, %23 : vector<4x128xi32>
    %cst_19 = arith.constant 0.000000e+00 : f32
    %25 = vector.broadcast %cst_19 : f32 to vector<4x128xf32>
    %26 = arith.select %24, %20, %25 : vector<4x128xi1>, vector<4x128xf32>
    %cst_20 = arith.constant dense<0.000000e+00> : vector<128xf32>
    %27 = vector.multi_reduction <add>, %26, %cst_20 [0] : vector<4x128xf32> to vector<128xf32>
    %28 = vector.shape_cast %27 : vector<128xf32> to vector<1x128xf32>
    %c0_21 = arith.constant 0 : index
    %c0_22 = arith.constant 0 : index
    %29 = vector.load %arg9[%c0_21, %c0_22] : memref<1x128xf32, #tpu.memory_space<vmem>>, vector<1x128xf32>
    tpu.vector_store %arg9[%c0_21, %c0_22], %28 {strides = array<i32>} : memref<1x128xf32, #tpu.memory_space<vmem>>, vector<1x128xf32>,
    return
  }
  func.func @transform_0(%arg0: i32) -> (i32, i32) {
    %c0_i32 = arith.constant 0 : i32
    %c0_i32_0 = arith.constant 0 : i32
    return %c0_i32, %arg0 : i32, i32
  }
  func.func @transform_1(%arg0: i32) -> (i32, i32) {
    %c0_i32 = arith.constant 0 : i32
    %c0_i32_0 = arith.constant 0 : i32
    %c0_i32_1 = arith.constant 0 : i32
    return %c0_i32, %c0_i32_0 : i32, i32
  }
  func.func @transform_2(%arg0: i32) -> (i32, i32) {
    %c0_i32 = arith.constant 0 : i32
    %c0_i32_0 = arith.constant 0 : i32
    %c0_i32_1 = arith.constant 0 : i32
    return %c0_i32, %c0_i32_0 : i32, i32
  }
  func.func @transform_3(%arg0: i32) -> (i32, i32) {
    %c0_i32 = arith.constant 0 : i32
    %c0_i32_0 = arith.constant 0 : i32
    %c0_i32_1 = arith.constant 0 : i32
    return %c0_i32, %c0_i32_0 : i32, i32
  }
  func.func @transform_4(%arg0: i32) -> (i32, i32) {
    %c0_i32 = arith.constant 0 : i32
    %c0_i32_0 = arith.constant 0 : i32
    %c0_i32_1 = arith.constant 0 : i32
    return %c0_i32, %c0_i32_0 : i32, i32
  }
  func.func @transform_5(%arg0: i32) -> (i32, i32) {
    %c0_i32 = arith.constant 0 : i32
    %c0_i32_0 = arith.constant 0 : i32
    %c0_i32_1 = arith.constant 0 : i32
    return %c0_i32, %c0_i32_0 : i32, i32
  }
  func.func @transform_6(%arg0: i32) -> (i32, i32) {
    %c0_i32 = arith.constant 0 : i32
    %c0_i32_0 = arith.constant 0 : i32
    %c0_i32_1 = arith.constant 0 : i32
    return %c0_i32, %c0_i32_0 : i32, i32
  }
  func.func @transform_7(%arg0: i32) -> (i32, i32) {
    %c0_i32 = arith.constant 0 : i32
    %c0_i32_0 = arith.constant 0 : i32
    return %c0_i32, %arg0 : i32, i32
  }
  func.func @transform_8(%arg0: i32) -> (i32, i32) {
    %c0_i32 = arith.constant 0 : i32
    %c0_i32_0 = arith.constant 0 : i32
    return %c0_i32, %arg0 : i32, i32
  }
}

</mosaic_0001>

<llo_original>
// kernel: tpu_custom_call.1
$region0: #{tpu_custom_call.1}
  #allocation0 [shape = 'u32[]', space=smem, size = 0x4, offset = 0x4, fixed_abs, tag = 'smem constant byte address 0x4 - core index']
  #allocation1 [shape = 'u32[144,128]{1,0:T(1,128)}', space=vmem, size = 0x12000, scoped, tag = 'internal scratch']
  %s0 = inlined_call_operand.vmem [shape: f32[4,128], index: 0, kind: input, shape index: {}]
  %s1 = inlined_call_operand.vmem [shape: f32[32,4], index: 1, kind: input, shape index: {}]
  %s2 = inlined_call_operand.vmem [shape: f32[32,1], index: 2, kind: input, shape index: {}]
  %s3 = inlined_call_operand.vmem [shape: f32[32,32], index: 3, kind: input, shape index: {}]
  %s4 = inlined_call_operand.vmem [shape: f32[32,1], index: 4, kind: input, shape index: {}]
  %s5 = inlined_call_operand.vmem [shape: f32[4,32], index: 5, kind: input, shape index: {}]
  %s6 = inlined_call_operand.vmem [shape: f32[4,1], index: 6, kind: input, shape index: {}]
  %s7 = inlined_call_operand.vmem [shape: s32[1,128], index: 7, kind: input, shape index: {}]
  %s8 = inlined_call_operand.hbm [shape: f32[1,128], index: 8, kind: output, shape index: {}]
  %s9 = sld [smem:[#allocation0]]
  $region42: #{tpu_custom_call.1} parent=0
    _
  %s11 = ssub.s32 1, %s9
  %s12 = scalar_select 0, %s11, %s9
  $region1: #{tpu_custom_call.1} parent=0
    #allocation2 [shape = 'u8[512]{0}', space=vmem, size = 0x400, scoped, tag = 'output window, operand 0, single buffered']
    #allocation3 [shape = 's32[1]{0}', space=sflag, size = 0x4, scoped, tag = 'scoped memory for tpu_custom_call.1']
    %13 = vsyncpa [#allocation3], 0
    // Predicated region
    $region2: #{tpu_custom_call.1} parent=1 // pred_check
      _
    $region3: #{tpu_custom_call.1} parent=1 // pred_check_branch
      %15 = sbr.rel (0) target = $region5
    $region4: #{tpu_custom_call.1} parent=1 // pred_region
      _
    $region5: #{tpu_custom_call.1} parent=1 // pred_fallthru
      _
    // Predicated region
    $region6: #{tpu_custom_call.1} parent=1 // pred_check
      _
    $region7: #{tpu_custom_call.1} parent=1 // pred_check_branch
      %17 = sbr.rel (0) target = $region9
    $region8: #{tpu_custom_call.1} parent=1 // pred_region
      _
    $region9: #{tpu_custom_call.1} parent=1 // pred_fallthru
      _
    // Predicated region
    $region10: #{tpu_custom_call.1} parent=1 // pred_check
      _
    $region11: #{tpu_custom_call.1} parent=1 // pred_check_branch
      %19 = sbr.rel (0) target = $region13
    $region12: #{tpu_custom_call.1} parent=1 // pred_region
      _
    $region13: #{tpu_custom_call.1} parent=1 // pred_fallthru
      _
    // Predicated region
    $region14: #{tpu_custom_call.1} parent=1 // pred_check
      _
    $region15: #{tpu_custom_call.1} parent=1 // pred_check_branch
      %21 = sbr.rel (0) target = $region17
    $region16: #{tpu_custom_call.1} parent=1 // pred_region
      _
    $region17: #{tpu_custom_call.1} parent=1 // pred_fallthru
      _
    // Predicated region
    $region18: #{tpu_custom_call.1} parent=1 // pred_check
      _
    $region19: #{tpu_custom_call.1} parent=1 // pred_check_branch
      %23 = sbr.rel (0) target = $region21
    $region20: #{tpu_custom_call.1} parent=1 // pred_region
      _
    $region21: #{tpu_custom_call.1} parent=1 // pred_fallthru
      _
    // Predicated region
    $region22: #{tpu_custom_call.1} parent=1 // pred_check
      _
    $region23: #{tpu_custom_call.1} parent=1 // pred_check_branch
      %25 = sbr.rel (0) target = $region25
    $region24: #{tpu_custom_call.1} parent=1 // pred_region
      _
    $region25: #{tpu_custom_call.1} parent=1 // pred_fallthru
      _
    // Predicated region
    $region26: #{tpu_custom_call.1} parent=1 // pred_check
      _
    $region27: #{tpu_custom_call.1} parent=1 // pred_check_branch
      %27 = sbr.rel (0) target = $region29
    $region28: #{tpu_custom_call.1} parent=1 // pred_region
      _
    $region29: #{tpu_custom_call.1} parent=1 // pred_fallthru
      _
    // Predicated region
    $region30: #{tpu_custom_call.1} parent=1 // pred_check
      _
    $region31: #{tpu_custom_call.1} parent=1 // pred_check_branch
      %29 = sbr.rel (0) target = $region33
    $region32: #{tpu_custom_call.1} parent=1 // pred_region
      _
    $region33: #{tpu_custom_call.1} parent=1 // pred_fallthru
      _
    %v30 = vld [vmem:[%s0] sm:$0xf]
    %v31 = vld [vmem:[%s1] sm:$0xff]
    %v32 = vld [vmem:[%s1 + $0x8] sm:$0xff]
    %v33 = vld [vmem:[%s1 + $0x10] sm:$0xff]
    %v34 = vld [vmem:[%s1 + $0x18] sm:$0xff]
    %v35 = vld [vmem:[%s2] sm:$0xff]
    %v36 = vld [vmem:[%s2 + $0x8] sm:$0xff]
    %v37 = vld [vmem:[%s2 + $0x10] sm:$0xff]
    %v38 = vld [vmem:[%s2 + $0x18] sm:$0xff]
    %40 = vset.pattern.permute.xlu0 0
    %41 = vperm.xlu0 %40, %v35
    %v42 = vpop.permute.xlu0 %41
    %45 = vset.pattern.permute.xlu0 0
    %46 = vperm.xlu0 %45, %v36
    %v47 = vpop.permute.xlu0 %46
    %50 = vset.pattern.permute.xlu0 0
    %51 = vperm.xlu0 %50, %v37
    %v52 = vpop.permute.xlu0 %51
    %55 = vset.pattern.permute.xlu0 0
    %56 = vperm.xlu0 %55, %v38
    %v57 = vpop.permute.xlu0 %56
    %vm59 = vcmask 31744
    %v61 = vsel %vm59, %v31, 0
    %v64 = vsel %vm59, %v32, 0
    %v67 = vsel %vm59, %v33, 0
    %v70 = vsel %vm59, %v34, 0
    %vm72 = vcmask 1043456
    %v74 = vsel %vm72, %v30, 0
    %76 = vmatprep.subr.mxu0 0.0
    %77 = vmatpush1.msra.mxu0 %v74
    %78 = vmatprep.subr.mxu0 0.0
    %79 = vmatpush1.msra.mxu0 0.0
    %80 = vmatprep.subr.mxu0 0.0
    %81 = vmatpush1.msra.mxu0 0.0
    %82 = vmatprep.subr.mxu0 0.0
    %83 = vmatpush1.msra.mxu0 0.0
    %84 = vmatprep.subr.mxu0 0.0
    %85 = vmatpush1.msra.mxu0 0.0
    %86 = vmatprep.subr.mxu0 0.0
    %87 = vmatpush1.msra.mxu0 0.0
    %88 = vmatprep.subr.mxu0 0.0
    %89 = vmatpush1.msra.mxu0 0.0
    %90 = vmatprep.subr.mxu0 0.0
    %91 = vmatpush1.msra.mxu0 0.0
    %92 = vmatprep.subr.mxu0 0.0
    %93 = vmatpush1.msra.mxu0 0.0
    %94 = vmatprep.subr.mxu0 0.0
    %95 = vmatpush1.msra.mxu0 0.0
    %96 = vmatprep.subr.mxu0 0.0
    %97 = vmatpush1.msra.mxu0 0.0
    %98 = vmatprep.subr.mxu0 0.0
    %99 = vmatpush1.msra.mxu0 0.0
    %100 = vmatprep.subr.mxu0 0.0
    %101 = vmatpush1.msra.mxu0 0.0
    %102 = vmatprep.subr.mxu0 0.0
    %103 = vmatpush1.msra.mxu0 0.0
    %104 = vmatprep.subr.mxu0 0.0
    %105 = vmatpush1.msra.mxu0 0.0
    %106 = vmatprep.subr.mxu0 0.0
    %107 = vmatpush1.msra.mxu0 0.0
    %108 = vmatprep.subr.mxu0 0.0
    %109 = vmatpush1.msra.mxu0 0.0
    %110 = vmatprep.subr.mxu0 0.0
    %111 = vmatpush1.msra.mxu0 0.0
    %112 = vmatprep.subr.mxu0 0.0
    %113 = vmatpush1.msra.mxu0 0.0
    %114 = vmatprep.subr.mxu0 0.0
    %115 = vmatpush1.msra.mxu0 0.0
    %116 = vmatprep.subr.mxu0 0.0
    %117 = vmatpush1.msra.mxu0 0.0
    %118 = vmatprep.subr.mxu0 0.0
    %119 = vmatpush1.msra.mxu0 0.0
    %120 = vmatprep.subr.mxu0 0.0
    %121 = vmatpush1.msra.mxu0 0.0
    %122 = vmatprep.subr.mxu0 0.0
    %123 = vmatpush1.msra.mxu0 0.0
    %124 = vmatprep.subr.mxu0 0.0
    %125 = vmatpush1.msra.mxu0 0.0
    %126 = vmatprep.subr.mxu0 0.0
    %127 = vmatpush1.msra.mxu0 0.0
    %128 = vmatprep.subr.mxu0 0.0
    %129 = vmatpush1.msra.mxu0 0.0
    %130 = vmatprep.subr.mxu0 0.0
    %131 = vmatpush1.msra.mxu0 0.0
    %132 = vmatprep.subr.mxu0 0.0
    %133 = vmatpush1.msra.mxu0 0.0
    %134 = vmatprep.subr.mxu0 0.0
    %135 = vmatpush1.msra.mxu0 0.0
    %136 = vmatprep.subr.mxu0 0.0
    %137 = vmatpush1.msra.mxu0 0.0
    %138 = vmatprep.subr.mxu0 0.0
    %139 = vmatpush1.msra.mxu0 0.0
    %140 = vmatprep.mubr.f32.mxu0 0.0
    %141 = vmatmul.mubr.f32.gmra.mrb[0].mxu0 %v61
    %v142 = vpop.f32.mrb[0].mxu0
    %v143 = vadd.f32 %v42, %v142
    %v144 = vpop.f32.mrb[0].mxu0
    %145 = vmatprep.mubr.f32.mxu0 0.0
    %146 = vmatmul.mubr.f32.gmra.mrb[0].mxu0 %v64
    %v147 = vpop.f32.mrb[0].mxu0
    %v148 = vadd.f32 %v47, %v147
    %v149 = vpop.f32.mrb[0].mxu0
    %150 = vmatprep.mubr.f32.mxu0 0.0
    %151 = vmatmul.mubr.f32.gmra.mrb[0].mxu0 %v67
    %v152 = vpop.f32.mrb[0].mxu0
    %v153 = vadd.f32 %v52, %v152
    %v154 = vpop.f32.mrb[0].mxu0
    %155 = vmatprep.mubr.f32.mxu0 0.0
    %156 = vmatmul.mubr.f32.gmra.mrb[0].mxu0 %v70
    %v157 = vpop.f32.mrb[0].mxu0
    %v158 = vadd.f32 %v57, %v157
    %v159 = vpop.f32.mrb[0].mxu0
    %160 = vdwg.mxu0
    %v161 = vmax.f32 %v143, 0.0
    %v162 = vmax.f32 %v148, 0.0
    %v163 = vmax.f32 %v153, 0.0
    %v164 = vmax.f32 %v158, 0.0
    %v165 = vld [vmem:[%s3] sm:$0xff]
    %v166 = vld [vmem:[%s3 + $0x8] sm:$0xff]
    %v167 = vld [vmem:[%s3 + $0x10] sm:$0xff]
    %v168 = vld [vmem:[%s3 + $0x18] sm:$0xff]
    %v169 = vld [vmem:[%s4] sm:$0xff]
    %v170 = vld [vmem:[%s4 + $0x8] sm:$0xff]
    %v171 = vld [vmem:[%s4 + $0x10] sm:$0xff]
    %v172 = vld [vmem:[%s4 + $0x18] sm:$0xff]
    %174 = vset.pattern.permute.xlu0 0
    %175 = vperm.xlu0 %174, %v169
    %v176 = vpop.permute.xlu0 %175
    %179 = vset.pattern.permute.xlu0 0
    %180 = vperm.xlu0 %179, %v170
    %v181 = vpop.permute.xlu0 %180
    %184 = vset.pattern.permute.xlu0 0
    %185 = vperm.xlu0 %184, %v171
    %v186 = vpop.permute.xlu0 %185
    %189 = vset.pattern.permute.xlu0 0
    %190 = vperm.xlu0 %189, %v172
    %v191 = vpop.permute.xlu0 %190
    %vm193 = vcmask 261120
    %v195 = vsel %vm193, %v165, 0
    %v198 = vsel %vm193, %v166, 0
    %v201 = vsel %vm193, %v167, 0
    %v204 = vsel %vm193, %v168, 0
    %206 = vmatprep.subr.mxu0 0.0
    %207 = vmatpush1.msra.mxu0 %v161
    %208 = vmatprep.subr.mxu0 0.0
    %209 = vmatpush1.msra.mxu0 %v162
    %210 = vmatprep.subr.mxu0 0.0
    %211 = vmatpush1.msra.mxu0 %v163
    %212 = vmatprep.subr.mxu0 0.0
    %213 = vmatpush1.msra.mxu0 %v164
    %214 = vmatprep.subr.mxu0 0.0
    %215 = vmatpush1.msra.mxu0 0.0
    %216 = vmatprep.subr.mxu0 0.0
    %217 = vmatpush1.msra.mxu0 0.0
    %218 = vmatprep.subr.mxu0 0.0
    %219 = vmatpush1.msra.mxu0 0.0
    %220 = vmatprep.subr.mxu0 0.0
    %221 = vmatpush1.msra.mxu0 0.0
    %222 = vmatprep.subr.mxu0 0.0
    %223 = vmatpush1.msra.mxu0 0.0
    %224 = vmatprep.subr.mxu0 0.0
    %225 = vmatpush1.msra.mxu0 0.0
    %226 = vmatprep.subr.mxu0 0.0
    %227 = vmatpush1.msra.mxu0 0.0
    %228 = vmatprep.subr.mxu0 0.0
    %229 = vmatpush1.msra.mxu0 0.0
    %230 = vmatprep.subr.mxu0 0.0
    %231 = vmatpush1.msra.mxu0 0.0
    %232 = vmatprep.subr.mxu0 0.0
    %233 = vmatpush1.msra.mxu0 0.0
    %234 = vmatprep.subr.mxu0 0.0
    %235 = vmatpush1.msra.mxu0 0.0
    %236 = vmatprep.subr.mxu0 0.0
    %237 = vmatpush1.msra.mxu0 0.0
    %238 = vmatprep.subr.mxu0 0.0
    %239 = vmatpush1.msra.mxu0 0.0
    %240 = vmatprep.subr.mxu0 0.0
    %241 = vmatpush1.msra.mxu0 0.0
    %242 = vmatprep.subr.mxu0 0.0
    %243 = vmatpush1.msra.mxu0 0.0
    %244 = vmatprep.subr.mxu0 0.0
    %245 = vmatpush1.msra.mxu0 0.0
    %246 = vmatprep.subr.mxu0 0.0
    %247 = vmatpush1.msra.mxu0 0.0
    %248 = vmatprep.subr.mxu0 0.0
    %249 = vmatpush1.msra.mxu0 0.0
    %250 = vmatprep.subr.mxu0 0.0
    %251 = vmatpush1.msra.mxu0 0.0
    %252 = vmatprep.subr.mxu0 0.0
    %253 = vmatpush1.msra.mxu0 0.0
    %254 = vmatprep.subr.mxu0 0.0
    %255 = vmatpush1.msra.mxu0 0.0
    %256 = vmatprep.subr.mxu0 0.0
    %257 = vmatpush1.msra.mxu0 0.0
    %258 = vmatprep.subr.mxu0 0.0
    %259 = vmatpush1.msra.mxu0 0.0
    %260 = vmatprep.subr.mxu0 0.0
    %261 = vmatpush1.msra.mxu0 0.0
    %262 = vmatprep.subr.mxu0 0.0
    %263 = vmatpush1.msra.mxu0 0.0
    %264 = vmatprep.subr.mxu0 0.0
    %265 = vmatpush1.msra.mxu0 0.0
    %266 = vmatprep.subr.mxu0 0.0
    %267 = vmatpush1.msra.mxu0 0.0
    %268 = vmatprep.subr.mxu0 0.0
    %269 = vmatpush1.msra.mxu0 0.0
    %270 = vmatprep.mubr.f32.mxu0 0.0
    %271 = vmatmul.mubr.f32.gmra.mrb[0].mxu0 %v195
    %v272 = vpop.f32.mrb[0].mxu0
    %v273 = vadd.f32 %v176, %v272
    %v274 = vpop.f32.mrb[0].mxu0
    %275 = vmatprep.mubr.f32.mxu0 0.0
    %276 = vmatmul.mubr.f32.gmra.mrb[0].mxu0 %v198
    %v277 = vpop.f32.mrb[0].mxu0
    %v278 = vadd.f32 %v181, %v277
    %v279 = vpop.f32.mrb[0].mxu0
    %280 = vmatprep.mubr.f32.mxu0 0.0
    %281 = vmatmul.mubr.f32.gmra.mrb[0].mxu0 %v201
    %v282 = vpop.f32.mrb[0].mxu0
    %v283 = vadd.f32 %v186, %v282
    %v284 = vpop.f32.mrb[0].mxu0
    %285 = vmatprep.mubr.f32.mxu0 0.0
    %286 = vmatmul.mubr.f32.gmra.mrb[0].mxu0 %v204
    %v287 = vpop.f32.mrb[0].mxu0
    %v288 = vadd.f32 %v191, %v287
    %v289 = vpop.f32.mrb[0].mxu0
    %290 = vdwg.mxu0
    %v291 = vmax.f32 %v273, 0.0
    %v292 = vmax.f32 %v278, 0.0
    %v293 = vmax.f32 %v283, 0.0
    %v294 = vmax.f32 %v288, 0.0
    %v295 = vld [vmem:[%s5] sm:$0xf]
    %v296 = vld [vmem:[%s6] sm:$0xf]
    %298 = vset.pattern.permute.xlu0 0
    %299 = vperm.xlu0 %298, %v296
    %v300 = vpop.permute.xlu0 %299
    %v303 = vsel %vm193, %v295, 0
    %305 = vmatprep.subr.mxu0 0.0
    %306 = vmatpush1.msra.mxu0 %v291
    %307 = vmatprep.subr.mxu0 0.0
    %308 = vmatpush1.msra.mxu0 %v292
    %309 = vmatprep.subr.mxu0 0.0
    %310 = vmatpush1.msra.mxu0 %v293
    %311 = vmatprep.subr.mxu0 0.0
    %312 = vmatpush1.msra.mxu0 %v294
    %313 = vmatprep.subr.mxu0 0.0
    %314 = vmatpush1.msra.mxu0 0.0
    %315 = vmatprep.subr.mxu0 0.0
    %316 = vmatpush1.msra.mxu0 0.0
    %317 = vmatprep.subr.mxu0 0.0
    %318 = vmatpush1.msra.mxu0 0.0
    %319 = vmatprep.subr.mxu0 0.0
    %320 = vmatpush1.msra.mxu0 0.0
    %321 = vmatprep.subr.mxu0 0.0
    %322 = vmatpush1.msra.mxu0 0.0
    %323 = vmatprep.subr.mxu0 0.0
    %324 = vmatpush1.msra.mxu0 0.0
    %325 = vmatprep.subr.mxu0 0.0
    %326 = vmatpush1.msra.mxu0 0.0
    %327 = vmatprep.subr.mxu0 0.0
    %328 = vmatpush1.msra.mxu0 0.0
    %329 = vmatprep.subr.mxu0 0.0
    %330 = vmatpush1.msra.mxu0 0.0
    %331 = vmatprep.subr.mxu0 0.0
    %332 = vmatpush1.msra.mxu0 0.0
    %333 = vmatprep.subr.mxu0 0.0
    %334 = vmatpush1.msra.mxu0 0.0
    %335 = vmatprep.subr.mxu0 0.0
    %336 = vmatpush1.msra.mxu0 0.0
    %337 = vmatprep.subr.mxu0 0.0
    %338 = vmatpush1.msra.mxu0 0.0
    %339 = vmatprep.subr.mxu0 0.0
    %340 = vmatpush1.msra.mxu0 0.0
    %341 = vmatprep.subr.mxu0 0.0
    %342 = vmatpush1.msra.mxu0 0.0
    %343 = vmatprep.subr.mxu0 0.0
    %344 = vmatpush1.msra.mxu0 0.0
    %345 = vmatprep.subr.mxu0 0.0
    %346 = vmatpush1.msra.mxu0 0.0
    %347 = vmatprep.subr.mxu0 0.0
    %348 = vmatpush1.msra.mxu0 0.0
    %349 = vmatprep.subr.mxu0 0.0
    %350 = vmatpush1.msra.mxu0 0.0
    %351 = vmatprep.subr.mxu0 0.0
    %352 = vmatpush1.msra.mxu0 0.0
    %353 = vmatprep.subr.mxu0 0.0
    %354 = vmatpush1.msra.mxu0 0.0
    %355 = vmatprep.subr.mxu0 0.0
    %356 = vmatpush1.msra.mxu0 0.0
    %357 = vmatprep.subr.mxu0 0.0
    %358 = vmatpush1.msra.mxu0 0.0
    %359 = vmatprep.subr.mxu0 0.0
    %360 = vmatpush1.msra.mxu0 0.0
    %361 = vmatprep.subr.mxu0 0.0
    %362 = vmatpush1.msra.mxu0 0.0
    %363 = vmatprep.subr.mxu0 0.0
    %364 = vmatpush1.msra.mxu0 0.0
    %365 = vmatprep.subr.mxu0 0.0
    %366 = vmatpush1.msra.mxu0 0.0
    %367 = vmatprep.subr.mxu0 0.0
    %368 = vmatpush1.msra.mxu0 0.0
    %369 = vmatprep.mubr.f32.mxu0 0.0
    %370 = vmatmul.mubr.f32.gmra.mrb[0].mxu0 %v303
    %v371 = vpop.f32.mrb[0].mxu0
    %v372 = vadd.f32 %v300, %v371
    %v373 = vpop.f32.mrb[0].mxu0
    %374 = vdwg.mxu0
    %v375 = vand.u32 2147483647, %v372
    %v376 = vlaneseq
    %v377 = vshrl.u32 %v376, 7
    %v378 = vld [vmem:[%s7] sm:$0x1]
    %v379 = vlaneseq
    %v380 = vshrl.u32 %v379, 7
    %v381 = vsub.s32 0, %v380
    %v382 = vrot.slane %v378, %v381
    %vm383 = vcmp.eq.s32.totalorder %v377, %v382
    %v384 = vsel %vm383, %v375, 0.0
    %v385 = vsel %vm72, %v384, 0.0
    %v386 = vrot.slane %v385, 4
    %v387 = vadd.f32 %v385, %v386
    %v388 = vrot.slane %v387, 2
    %v389 = vadd.f32 %v387, %v388
    %v390 = vrot.slane %v389, 1
    %v391 = vadd.f32 %v389, %v390
    %392 = vst [vmem:[#allocation2] sm:$0x1] %v391
    // Predicated region
    $region34: #{tpu_custom_call.1} parent=1 // pred_check
      _
    $region35: #{tpu_custom_call.1} parent=1 // pred_check_branch
      %394 = sbr.rel (0) target = $region37
    $region36: #{tpu_custom_call.1} parent=1 // pred_region
      %s396 = ssub.s32 16, 16
      %397 = vsyncadd [#allocation3], %s396
      %s399 = sshll.u32 [#allocation2], 4
      %s400 = int_to_ptr.vmem [resolvable:$true] %s399
      %402 = dma.vmem_to_hbm [thread:$0]  %s400, 16, %s8, [#allocation3]
    $region37: #{tpu_custom_call.1} parent=1 // pred_fallthru
      _
    // Predicated region
    $region38: #{tpu_custom_call.1} parent=1 // pred_check
      _
    $region39: #{tpu_custom_call.1} parent=1 // pred_check_branch
      %404 = sbr.rel (0) target = $region41
    $region40: #{tpu_custom_call.1} parent=1 // pred_region
      %405 = dma.done [#allocation3], 16
    $region41: #{tpu_custom_call.1} parent=1 // pred_fallthru
      _
    %406 = vsyncpa [#allocation3], 1

</llo_original>
